<compile_context>
chip_gen: v7x
topology: tpu7x:2x2x1
jax: 0.10.0
libtpu: 0.0.40
codegen_flags: <defaults>
</compile_context>

<pallas_src>
import functools
import math

import jax
import jax.numpy as jnp
from jax import lax
from jax.experimental import pallas as pl
from jax.experimental.pallas import tpu as pltpu


def _attn_kernel(x_ref, wqkv_ref, wo_ref, bo_ref, o_ref, *,
                 num_heads, head_dim, scale):
    """One grid step = one batch element. x_ref/o_ref are (N, C)."""
    _, c = x_ref.shape
    mxu_dtype = wqkv_ref.dtype  # bf16 operands, f32 accumulation

    # --- fused QKV projection: single (N,C) x (C,3C) MXU op ---
    x = x_ref[...].astype(mxu_dtype)
    qkv = jnp.dot(x, wqkv_ref[...], preferred_element_type=jnp.float32)  # (N, 3C) f32

    # Fold 1/sqrt(head_dim) into q right after the projection.
    q_all = qkv[:, :c] * scale
    k_all = qkv[:, c:2 * c]
    v_all = qkv[:, 2 * c:]

    # --- per-head attention via static lane slices (no transposes) ---
    head_outs = []
    for h in range(num_heads):
        lo = h * head_dim
        qh = q_all[:, lo:lo + head_dim].astype(mxu_dtype)   # (N, hd)
        kh = k_all[:, lo:lo + head_dim].astype(mxu_dtype)   # (N, hd)
        vh = v_all[:, lo:lo + head_dim].astype(mxu_dtype)   # (N, hd)

        # energy = qh @ kh^T (contract last dims; no explicit transpose op)
        energy = lax.dot_general(qh, kh, (((1,), (1,)), ((), ())),
                                 preferred_element_type=jnp.float32)     # (N, N)

        # softmax over keys — f32 on the VPU, divide on the EUP.
        m = jnp.max(energy, axis=-1, keepdims=True)
        p = jnp.exp(energy - m)
        denom = jnp.sum(p, axis=-1, keepdims=True)
        attn = p * pl.reciprocal(denom, approx=True)

        head_outs.append(jnp.dot(attn.astype(mxu_dtype), vh,
                                 preferred_element_type=jnp.float32))    # (N, hd)

    concat = jnp.concatenate(head_outs, axis=-1)                         # (N, C)

    # --- output projection (+bias in f32) ---
    out = jnp.dot(concat.astype(mxu_dtype), wo_ref[...],
                  preferred_element_type=jnp.float32) + bo_ref[...]
    o_ref[...] = out.astype(o_ref.dtype)


def attention(x, params, num_heads, mxu_dtype=jnp.bfloat16):
    """x: (B, N, C) float32.  params: {'wqkv': (C,3C), 'wo': (C,C), 'bo': (1,C)}."""
    B, N, C = x.shape
    head_dim = C // num_heads
    scale = head_dim ** -0.5

    # Pre-cast MXU weight operands (halves weight DMA/VMEM); bias stays f32.
    wqkv = params['wqkv'].astype(mxu_dtype)
    wo = params['wo'].astype(mxu_dtype)
    bo = params['bo'].astype(jnp.float32)

    kernel = functools.partial(_attn_kernel, num_heads=num_heads,
                               head_dim=head_dim, scale=scale)

    act_spec = pl.BlockSpec((None, N, C), lambda b: (b, 0, 0))  # batch squeezed

    return pl.pallas_call(
        kernel,
        out_shape=jax.ShapeDtypeStruct((B, N, C), x.dtype),
        grid_spec=pltpu.PrefetchScalarGridSpec(
            num_scalar_prefetch=0,
            grid=(B,),
            in_specs=[
                act_spec,                                      # x
                pl.BlockSpec((C, 3 * C), lambda b: (0, 0)),    # fused qkv weight
                pl.BlockSpec((C, C), lambda b: (0, 0)),        # proj weight
                pl.BlockSpec((1, C), lambda b: (0, 0)),        # proj bias
            ],
            out_specs=act_spec,
        ),
        compiler_params=pltpu.CompilerParams(
            dimension_semantics=("parallel",)),
    )(x, wqkv, wo, bo)


def reference_attention(x, params, num_heads):
    """Pure-JAX f32 reference mirroring the PyTorch forward exactly."""
    B, N, C = x.shape
    hd = C // num_heads
    scale = hd ** -0.5
    qkv = x @ params['wqkv']                                   # (B, N, 3C)
    qkv = qkv.reshape(B, N, 3, num_heads, hd).transpose(2, 0, 3, 1, 4)
    q, k, v = qkv[0], qkv[1], qkv[2]                           # (B, nh, N, hd)
    attn = jnp.einsum('bhqd,bhkd->bhqk', q, k) * scale
    attn = jax.nn.softmax(attn, axis=-1)
    out = jnp.einsum('bhqk,bhkd->bhqd', attn, v)
    out = out.transpose(0, 2, 1, 3).reshape(B, N, C)
    return out @ params['wo'] + params['bo']


def init_params(key, dim):
    """Deterministic synthetic parameters (weights stored as (C_in, C_out))."""
    ks = jax.random.split(key, 3)
    bound = 1.0 / math.sqrt(dim)
    return {
        'wqkv': jax.random.uniform(ks[0], (dim, 3 * dim), jnp.float32, -bound, bound),
        'wo':   jax.random.uniform(ks[1], (dim, dim), jnp.float32, -bound, bound),
        'bo':   jax.random.uniform(ks[2], (1, dim), jnp.float32, -bound, bound),
    }


if __name__ == "__main__":
    # TODO(synk): attn_drop / proj_drop are identity at the module's default
    # 0.0 ratios (eval mode); stochastic dropout is not implemented.
    B, N, C, NH = 2, 8, 32, 4

    root = jax.random.PRNGKey(0)
    k_params, k_x = jax.random.split(root)

    params = init_params(k_params, C)
    x = jax.random.normal(k_x, (B, N, C), jnp.float32)

    out = attention(x, params, NH)
    out = jax.block_until_ready(out)

    ref = reference_attention(x, params, NH)
    assert out.shape == (B, N, C)
    max_err = float(jnp.max(jnp.abs(out - ref)))
    # bf16 MXU operands (f32 accumulate) + approx reciprocal -> loosened tol.
    assert jnp.allclose(out, ref, atol=3e-2, rtol=3e-2), \
        f"mismatch vs reference (max abs err {max_err})"

    print("KERNEL_OK")
</pallas_src>

<mosaic_0001>
module attributes {stable_mosaic.version = 11 : i64} {
  func.func @_attn_kernel(%arg0: i32, %arg1: memref<1x8x32xf32, #tpu.memory_space<vmem>>, %arg2: memref<32x96xbf16, #tpu.memory_space<vmem>>, %arg3: memref<32x32xbf16, #tpu.memory_space<vmem>>, %arg4: memref<1x32xf32, #tpu.memory_space<vmem>>, %arg5: memref<1x8x32xf32, #tpu.memory_space<vmem>>) attributes {dimension_semantics = [#tpu.dimension_semantics<parallel>], iteration_bounds = array<i64: 2>, scalar_prefetch = 0 : i64, scratch_operands = 0 : i64, tpu.core_type = #tpu.core_type<tc>, window_params = [{transform_indices = @transform_0, window_bounds = array<i64: 1, 8, 32>}, {pipeline_mode = #tpu.pipeline_mode<synchronous>, transform_indices = @transform_1, window_bounds = array<i64: 32, 96>}, {pipeline_mode = #tpu.pipeline_mode<synchronous>, transform_indices = @transform_2, window_bounds = array<i64: 32, 32>}, {pipeline_mode = #tpu.pipeline_mode<synchronous>, transform_indices = @transform_3, window_bounds = array<i64: 1, 32>}, {transform_indices = @transform_4, window_bounds = array<i64: 1, 8, 32>}]} {
    %c0 = arith.constant 0 : index
    %c0_0 = arith.constant 0 : index
    %c0_1 = arith.constant 0 : index
    %0 = vector.load %arg1[%c0, %c0_0, %c0_1] : memref<1x8x32xf32, #tpu.memory_space<vmem>>, vector<1x8x32xf32>
    %1 = vector.shape_cast %0 : vector<1x8x32xf32> to vector<8x32xf32>
    %2 = arith.truncf %1 : vector<8x32xf32> to vector<8x32xbf16>
    %c0_2 = arith.constant 0 : index
    %c0_3 = arith.constant 0 : index
    %3 = vector.load %arg2[%c0_2, %c0_3] : memref<32x96xbf16, #tpu.memory_space<vmem>>, vector<32x96xbf16>
    %cst = arith.constant dense<0.000000e+00> : vector<8x96xf32>
    %4 = tpu.matmul %2, %3, %cst {dimension_numbers = #tpu.dot_dimension_numbers<[1], [0], [0], [1], [0, 0, 1, 1], [], []>} : vector<8x32xbf16>, vector<32x96xbf16>, vector<8x96xf32> -> vector<8x96xf32>
    %5 = vector.extract_strided_slice %4 {offsets = [0, 0], sizes = [8, 32], strides = [1, 1]} : vector<8x96xf32> to vector<8x32xf32>
    %cst_4 = arith.constant 0.353553385 : f32
    %6 = vector.broadcast %cst_4 : f32 to vector<8x32xf32>
    %7 = arith.mulf %5, %6 : vector<8x32xf32>
    %8 = vector.extract_strided_slice %4 {offsets = [0, 32], sizes = [8, 32], strides = [1, 1]} : vector<8x96xf32> to vector<8x32xf32>
    %9 = vector.extract_strided_slice %4 {offsets = [0, 64], sizes = [8, 32], strides = [1, 1]} : vector<8x96xf32> to vector<8x32xf32>
    %10 = vector.extract_strided_slice %7 {offsets = [0, 0], sizes = [8, 8], strides = [1, 1]} : vector<8x32xf32> to vector<8x8xf32>
    %11 = arith.truncf %10 : vector<8x8xf32> to vector<8x8xbf16>
    %12 = vector.extract_strided_slice %8 {offsets = [0, 0], sizes = [8, 8], strides = [1, 1]} : vector<8x32xf32> to vector<8x8xf32>
    %13 = arith.truncf %12 : vector<8x8xf32> to vector<8x8xbf16>
    %14 = vector.extract_strided_slice %9 {offsets = [0, 0], sizes = [8, 8], strides = [1, 1]} : vector<8x32xf32> to vector<8x8xf32>
    %15 = arith.truncf %14 : vector<8x8xf32> to vector<8x8xbf16>
    %cst_5 = arith.constant dense<0.000000e+00> : vector<8x8xf32>
    %16 = tpu.matmul %11, %13, %cst_5 {dimension_numbers = #tpu.dot_dimension_numbers<[1], [1], [0], [0], [0, 0, 1, 0], [], []>} : vector<8x8xbf16>, vector<8x8xbf16>, vector<8x8xf32> -> vector<8x8xf32>
    %cst_6 = arith.constant dense<0xFF800000> : vector<8xf32>
    %17 = vector.multi_reduction <maximumf>, %16, %cst_6 [1] : vector<8x8xf32> to vector<8xf32>
    %18 = vector.shape_cast %17 : vector<8xf32> to vector<8x1xf32>
    %19 = vector.broadcast %18 : vector<8x1xf32> to vector<8x8xf32>
    %20 = arith.subf %16, %19 : vector<8x8xf32>
    %21 = math.exp %20 : vector<8x8xf32>
    %cst_7 = arith.constant dense<0.000000e+00> : vector<8xf32>
    %22 = vector.multi_reduction <add>, %21, %cst_7 [1] : vector<8x8xf32> to vector<8xf32>
    %23 = vector.shape_cast %22 : vector<8xf32> to vector<8x1xf32>
    %24 = tpu.reciprocal %23 {approx = true} : vector<8x1xf32> -> vector<8x1xf32>
    %25 = vector.broadcast %24 : vector<8x1xf32> to vector<8x8xf32>
    %26 = arith.mulf %21, %25 : vector<8x8xf32>
    %27 = arith.truncf %26 : vector<8x8xf32> to vector<8x8xbf16>
    %cst_8 = arith.constant dense<0.000000e+00> : vector<8x8xf32>
    %28 = tpu.matmul %27, %15, %cst_8 {dimension_numbers = #tpu.dot_dimension_numbers<[1], [0], [0], [1], [0, 0, 1, 1], [], []>} : vector<8x8xbf16>, vector<8x8xbf16>, vector<8x8xf32> -> vector<8x8xf32>
    %29 = vector.extract_strided_slice %7 {offsets = [0, 8], sizes = [8, 8], strides = [1, 1]} : vector<8x32xf32> to vector<8x8xf32>
    %30 = arith.truncf %29 : vector<8x8xf32> to vector<8x8xbf16>
    %31 = vector.extract_strided_slice %8 {offsets = [0, 8], sizes = [8, 8], strides = [1, 1]} : vector<8x32xf32> to vector<8x8xf32>
    %32 = arith.truncf %31 : vector<8x8xf32> to vector<8x8xbf16>
    %33 = vector.extract_strided_slice %9 {offsets = [0, 8], sizes = [8, 8], strides = [1, 1]} : vector<8x32xf32> to vector<8x8xf32>
    %34 = arith.truncf %33 : vector<8x8xf32> to vector<8x8xbf16>
    %cst_9 = arith.constant dense<0.000000e+00> : vector<8x8xf32>
    %35 = tpu.matmul %30, %32, %cst_9 {dimension_numbers = #tpu.dot_dimension_numbers<[1], [1], [0], [0], [0, 0, 1, 0], [], []>} : vector<8x8xbf16>, vector<8x8xbf16>, vector<8x8xf32> -> vector<8x8xf32>
    %cst_10 = arith.constant dense<0xFF800000> : vector<8xf32>
    %36 = vector.multi_reduction <maximumf>, %35, %cst_10 [1] : vector<8x8xf32> to vector<8xf32>
    %37 = vector.shape_cast %36 : vector<8xf32> to vector<8x1xf32>
    %38 = vector.broadcast %37 : vector<8x1xf32> to vector<8x8xf32>
    %39 = arith.subf %35, %38 : vector<8x8xf32>
    %40 = math.exp %39 : vector<8x8xf32>
    %cst_11 = arith.constant dense<0.000000e+00> : vector<8xf32>
    %41 = vector.multi_reduction <add>, %40, %cst_11 [1] : vector<8x8xf32> to vector<8xf32>
    %42 = vector.shape_cast %41 : vector<8xf32> to vector<8x1xf32>
    %43 = tpu.reciprocal %42 {approx = true} : vector<8x1xf32> -> vector<8x1xf32>
    %44 = vector.broadcast %43 : vector<8x1xf32> to vector<8x8xf32>
    %45 = arith.mulf %40, %44 : vector<8x8xf32>
    %46 = arith.truncf %45 : vector<8x8xf32> to vector<8x8xbf16>
    %cst_12 = arith.constant dense<0.000000e+00> : vector<8x8xf32>
    %47 = tpu.matmul %46, %34, %cst_12 {dimension_numbers = #tpu.dot_dimension_numbers<[1], [0], [0], [1], [0, 0, 1, 1], [], []>} : vector<8x8xbf16>, vector<8x8xbf16>, vector<8x8xf32> -> vector<8x8xf32>
    %48 = vector.extract_strided_slice %7 {offsets = [0, 16], sizes = [8, 8], strides = [1, 1]} : vector<8x32xf32> to vector<8x8xf32>
    %49 = arith.truncf %48 : vector<8x8xf32> to vector<8x8xbf16>
    %50 = vector.extract_strided_slice %8 {offsets = [0, 16], sizes = [8, 8], strides = [1, 1]} : vector<8x32xf32> to vector<8x8xf32>
    %51 = arith.truncf %50 : vector<8x8xf32> to vector<8x8xbf16>
    %52 = vector.extract_strided_slice %9 {offsets = [0, 16], sizes = [8, 8], strides = [1, 1]} : vector<8x32xf32> to vector<8x8xf32>
    %53 = arith.truncf %52 : vector<8x8xf32> to vector<8x8xbf16>
    %cst_13 = arith.constant dense<0.000000e+00> : vector<8x8xf32>
    %54 = tpu.matmul %49, %51, %cst_13 {dimension_numbers = #tpu.dot_dimension_numbers<[1], [1], [0], [0], [0, 0, 1, 0], [], []>} : vector<8x8xbf16>, vector<8x8xbf16>, vector<8x8xf32> -> vector<8x8xf32>
    %cst_14 = arith.constant dense<0xFF800000> : vector<8xf32>
    %55 = vector.multi_reduction <maximumf>, %54, %cst_14 [1] : vector<8x8xf32> to vector<8xf32>
    %56 = vector.shape_cast %55 : vector<8xf32> to vector<8x1xf32>
    %57 = vector.broadcast %56 : vector<8x1xf32> to vector<8x8xf32>
    %58 = arith.subf %54, %57 : vector<8x8xf32>
    %59 = math.exp %58 : vector<8x8xf32>
    %cst_15 = arith.constant dense<0.000000e+00> : vector<8xf32>
    %60 = vector.multi_reduction <add>, %59, %cst_15 [1] : vector<8x8xf32> to vector<8xf32>
    %61 = vector.shape_cast %60 : vector<8xf32> to vector<8x1xf32>
    %62 = tpu.reciprocal %61 {approx = true} : vector<8x1xf32> -> vector<8x1xf32>
    %63 = vector.broadcast %62 : vector<8x1xf32> to vector<8x8xf32>
    %64 = arith.mulf %59, %63 : vector<8x8xf32>
    %65 = arith.truncf %64 : vector<8x8xf32> to vector<8x8xbf16>
    %cst_16 = arith.constant dense<0.000000e+00> : vector<8x8xf32>
    %66 = tpu.matmul %65, %53, %cst_16 {dimension_numbers = #tpu.dot_dimension_numbers<[1], [0], [0], [1], [0, 0, 1, 1], [], []>} : vector<8x8xbf16>, vector<8x8xbf16>, vector<8x8xf32> -> vector<8x8xf32>
    %67 = vector.extract_strided_slice %7 {offsets = [0, 24], sizes = [8, 8], strides = [1, 1]} : vector<8x32xf32> to vector<8x8xf32>
    %68 = arith.truncf %67 : vector<8x8xf32> to vector<8x8xbf16>
    %69 = vector.extract_strided_slice %8 {offsets = [0, 24], sizes = [8, 8], strides = [1, 1]} : vector<8x32xf32> to vector<8x8xf32>
    %70 = arith.truncf %69 : vector<8x8xf32> to vector<8x8xbf16>
    %71 = vector.extract_strided_slice %9 {offsets = [0, 24], sizes = [8, 8], strides = [1, 1]} : vector<8x32xf32> to vector<8x8xf32>
    %72 = arith.truncf %71 : vector<8x8xf32> to vector<8x8xbf16>
    %cst_17 = arith.constant dense<0.000000e+00> : vector<8x8xf32>
    %73 = tpu.matmul %68, %70, %cst_17 {dimension_numbers = #tpu.dot_dimension_numbers<[1], [1], [0], [0], [0, 0, 1, 0], [], []>} : vector<8x8xbf16>, vector<8x8xbf16>, vector<8x8xf32> -> vector<8x8xf32>
    %cst_18 = arith.constant dense<0xFF800000> : vector<8xf32>
    %74 = vector.multi_reduction <maximumf>, %73, %cst_18 [1] : vector<8x8xf32> to vector<8xf32>
    %75 = vector.shape_cast %74 : vector<8xf32> to vector<8x1xf32>
    %76 = vector.broadcast %75 : vector<8x1xf32> to vector<8x8xf32>
    %77 = arith.subf %73, %76 : vector<8x8xf32>
    %78 = math.exp %77 : vector<8x8xf32>
    %cst_19 = arith.constant dense<0.000000e+00> : vector<8xf32>
    %79 = vector.multi_reduction <add>, %78, %cst_19 [1] : vector<8x8xf32> to vector<8xf32>
    %80 = vector.shape_cast %79 : vector<8xf32> to vector<8x1xf32>
    %81 = tpu.reciprocal %80 {approx = true} : vector<8x1xf32> -> vector<8x1xf32>
    %82 = vector.broadcast %81 : vector<8x1xf32> to vector<8x8xf32>
    %83 = arith.mulf %78, %82 : vector<8x8xf32>
    %84 = arith.truncf %83 : vector<8x8xf32> to vector<8x8xbf16>
    %cst_20 = arith.constant dense<0.000000e+00> : vector<8x8xf32>
    %85 = tpu.matmul %84, %72, %cst_20 {dimension_numbers = #tpu.dot_dimension_numbers<[1], [0], [0], [1], [0, 0, 1, 1], [], []>} : vector<8x8xbf16>, vector<8x8xbf16>, vector<8x8xf32> -> vector<8x8xf32>
    %86 = tpu.concatenate %28, %47, %66, %85 in 1 : vector<8x8xf32>, vector<8x8xf32>, vector<8x8xf32>, vector<8x8xf32> -> vector<8x32xf32>
    %87 = arith.truncf %86 : vector<8x32xf32> to vector<8x32xbf16>
    %c0_21 = arith.constant 0 : index
    %c0_22 = arith.constant 0 : index
    %88 = vector.load %arg3[%c0_21, %c0_22] : memref<32x32xbf16, #tpu.memory_space<vmem>>, vector<32x32xbf16>
    %cst_23 = arith.constant dense<0.000000e+00> : vector<8x32xf32>
    %89 = tpu.matmul %87, %88, %cst_23 {dimension_numbers = #tpu.dot_dimension_numbers<[1], [0], [0], [1], [0, 0, 1, 1], [], []>} : vector<8x32xbf16>, vector<32x32xbf16>, vector<8x32xf32> -> vector<8x32xf32>
    %c0_24 = arith.constant 0 : index
    %c0_25 = arith.constant 0 : index
    %90 = vector.load %arg4[%c0_24, %c0_25] : memref<1x32xf32, #tpu.memory_space<vmem>>, vector<1x32xf32>
    %91 = vector.broadcast %90 : vector<1x32xf32> to vector<8x32xf32>
    %92 = arith.addf %89, %91 : vector<8x32xf32>
    %c0_26 = arith.constant 0 : index
    %c0_27 = arith.constant 0 : index
    %c0_28 = arith.constant 0 : index
    %93 = vector.load %arg5[%c0_26, %c0_27, %c0_28] : memref<1x8x32xf32, #tpu.memory_space<vmem>>, vector<1x8x32xf32>
    %94 = vector.shape_cast %93 : vector<1x8x32xf32> to vector<8x32xf32>
    %95 = vector.shape_cast %92 : vector<8x32xf32> to vector<1x8x32xf32>
    tpu.vector_store %arg5[%c0_26, %c0_27, %c0_28], %95 {strides = array<i32>} : memref<1x8x32xf32, #tpu.memory_space<vmem>>, vector<1x8x32xf32>,
    return
  }
  func.func @transform_0(%arg0: i32) -> (i32, i32, i32) {
    %c0_i32 = arith.constant 0 : i32
    %c0_i32_0 = arith.constant 0 : i32
    %c0_i32_1 = arith.constant 0 : i32
    return %arg0, %c0_i32, %c0_i32_0 : i32, i32, i32
  }
  func.func @transform_1(%arg0: i32) -> (i32, i32) {
    %c0_i32 = arith.constant 0 : i32
    %c0_i32_0 = arith.constant 0 : i32
    %c0_i32_1 = arith.constant 0 : i32
    return %c0_i32, %c0_i32_0 : i32, i32
  }
  func.func @transform_2(%arg0: i32) -> (i32, i32) {
    %c0_i32 = arith.constant 0 : i32
    %c0_i32_0 = arith.constant 0 : i32
    %c0_i32_1 = arith.constant 0 : i32
    return %c0_i32, %c0_i32_0 : i32, i32
  }
  func.func @transform_3(%arg0: i32) -> (i32, i32) {
    %c0_i32 = arith.constant 0 : i32
    %c0_i32_0 = arith.constant 0 : i32
    %c0_i32_1 = arith.constant 0 : i32
    return %c0_i32, %c0_i32_0 : i32, i32
  }
  func.func @transform_4(%arg0: i32) -> (i32, i32, i32) {
    %c0_i32 = arith.constant 0 : i32
    %c0_i32_0 = arith.constant 0 : i32
    %c0_i32_1 = arith.constant 0 : i32
    return %arg0, %c0_i32, %c0_i32_0 : i32, i32, i32
  }
}

</mosaic_0001>

<llo_original>
// kernel: tpu_custom_call.1
$region0: #{tpu_custom_call.1}
  #allocation0 [shape = 'u32[]', space=smem, size = 0x4, offset = 0x4, fixed_abs, tag = 'smem constant byte address 0x4 - core index']
  #allocation1 [shape = 'u32[144,128]{1,0:T(1,128)}', space=vmem, size = 0x12000, scoped, tag = 'internal scratch']
  %s0 = inlined_call_operand.hbm [shape: f32[2,8,32], index: 0, kind: input, shape index: {}]
  %s1 = inlined_call_operand.hbm [shape: bf16[32,96], index: 1, kind: input, shape index: {}]
  %s2 = inlined_call_operand.hbm [shape: bf16[32,32], index: 2, kind: input, shape index: {}]
  %s3 = inlined_call_operand.vmem [shape: f32[1,32], index: 3, kind: input, shape index: {}]
  %s4 = inlined_call_operand.hbm [shape: f32[2,8,32], index: 4, kind: output, shape index: {}]
  %s5 = sld [smem:[#allocation0]]
  $region61: #{tpu_custom_call.1} parent=0
    _
  %s7 = ssub.s32 1, %s5
  %s8 = scalar_select 0, %s7, %s5
  $region1: #{tpu_custom_call.1} parent=0
    #allocation2 [shape = 'u8[8192]{0}', space=vmem, size = 0x2000, scoped, tag = 'input window, operand 0']
    #allocation3 [shape = 's32[2]{0}', space=sflag, size = 0x8, scoped, tag = 'scoped memory for tpu_custom_call.1']
    #allocation4 [shape = 's32[2]{0}', space=sflag, size = 0x8, scoped, tag = 'scoped memory for tpu_custom_call.1']
    #allocation5 [shape = 'u8[8192]{0}', space=vmem, size = 0x2000, scoped, tag = 'input window, operand 1, single buffered']
    #allocation6 [shape = 's32[1]{0}', space=sflag, size = 0x4, scoped, tag = 'scoped memory for tpu_custom_call.1']
    #allocation7 [shape = 'u8[8192]{0}', space=vmem, size = 0x2000, scoped, tag = 'input window, operand 2, single buffered']
    #allocation8 [shape = 'u8[8192]{0}', space=vmem, size = 0x2000, scoped, tag = 'output window, operand 0']
    %9 = vsyncpa [#allocation3], 0
    %s10 = scalar_lea.sflag [#allocation3], 1
    %11 = vsyncpa %s10, 0
    %12 = vsyncpa [#allocation6], 0
    %13 = vsyncpa [#allocation4], 0
    %s14 = scalar_lea.sflag [#allocation4], 1
    %15 = vsyncpa %s14, 0
    loop: start=0, step=1, limit=4
    $region2: #{tpu_custom_call.1} parent=1 // loop_pre_header
      _
    $region3: #{tpu_custom_call.1} parent=1 // loop_header
      %s17 = sphi 0, %s21
      %p18 = scmp.ge.s32.totalorder %s17, 4
      %s27 = sphi 0, %s29
      %s30 = sphi 0, %s27
      %s31 = sphi 0, %s30
      %s47 = sphi 0, %s31
      %s51 = sphi 0, %s51
      %s53 = sphi 0, %s51
      %s54 = sphi 0, %s53
      %s68 = sphi 0, %s54
      %s72 = sphi 0, %s72
      %s74 = sphi 0, %s72
      %s75 = sphi 0, %s74
      %s89 = sphi 0, %s75
      %s93 = sphi 0, %s93
      %s95 = sphi 0, %s93
      %s96 = sphi 0, %s95
      %s110 = sphi 0, %s96
      %s116 = sphi 0, %s118
      %s119 = sphi 0, %s116
      %s120 = sphi 0, %s119
      %s136 = sphi 0, %s120
    $region4: #{tpu_custom_call.1} parent=1 // loop_header_branch
      %20 = sbr.rel (%p18) target = $region8
    $region5: #{tpu_custom_call.1} parent=1 // loop_body
      %s22 = ssub.s32 %s17, 1
      %s23 = ssub.s32 %s17, 2
      %s24 = sadd.s32 %s17, 1
      %s25 = ssub.s32 %s17, %s24
      %p26 = scmp.eq.s32.totalorder %s25, 0
      %s28 = sadd.s32 %s27, 1
      %s29 = scalar_select %p26, %s27, %s28
      %p32 = pneg %p26
      %p33 = scmp.eq.s32.totalorder %s17, 1
      %p34 = por %p32, %p33
      %p35 = scmp.ne.s32.totalorder %s27, %s30
      %p36 = scmp.eq.s32.totalorder %s17, 0
      %p37 = por %p35, %p36
      %p38 = scmp.ne.s32.totalorder %s27, %s30
      %p39 = scmp.eq.s32.totalorder %s22, 1
      %p40 = por %p38, %p39
      %p41 = scmp.ne.s32.totalorder %s30, %s31
      %p42 = scmp.eq.s32.totalorder %s22, 0
      %p43 = por %p41, %p42
      %p44 = scmp.ne.s32.totalorder %s30, %s31
      %p45 = scmp.eq.s32.totalorder %s23, 1
      %p46 = por %p44, %p45
      %p48 = scmp.ne.s32.totalorder %s31, %s47
      %p49 = scmp.eq.s32.totalorder %s23, 0
      %p50 = por %p48, %p49
      %s52 = sadd.s32 %s51, 1
      %p55 = scmp.eq.s32.totalorder %s17, 1
      %p56 = scmp.ne.s32.totalorder %s51, %s53
      %p57 = scmp.eq.s32.totalorder %s17, 0
      %p58 = por %p56, %p57
      %p59 = scmp.ne.s32.totalorder %s51, %s53
      %p60 = scmp.eq.s32.totalorder %s22, 1
      %p61 = por %p59, %p60
      %p62 = scmp.ne.s32.totalorder %s53, %s54
      %p63 = scmp.eq.s32.totalorder %s22, 0
      %p64 = por %p62, %p63
      %p65 = scmp.ne.s32.totalorder %s53, %s54
      %p66 = scmp.eq.s32.totalorder %s23, 1
      %p67 = por %p65, %p66
      %p69 = scmp.ne.s32.totalorder %s54, %s68
      %p70 = scmp.eq.s32.totalorder %s23, 0
      %p71 = por %p69, %p70
      %s73 = sadd.s32 %s72, 1
      %p76 = scmp.eq.s32.totalorder %s17, 1
      %p77 = scmp.ne.s32.totalorder %s72, %s74
      %p78 = scmp.eq.s32.totalorder %s17, 0
      %p79 = por %p77, %p78
      %p80 = scmp.ne.s32.totalorder %s72, %s74
      %p81 = scmp.eq.s32.totalorder %s22, 1
      %p82 = por %p80, %p81
      %p83 = scmp.ne.s32.totalorder %s74, %s75
      %p84 = scmp.eq.s32.totalorder %s22, 0
      %p85 = por %p83, %p84
      %p86 = scmp.ne.s32.totalorder %s74, %s75
      %p87 = scmp.eq.s32.totalorder %s23, 1
      %p88 = por %p86, %p87
      %p90 = scmp.ne.s32.totalorder %s75, %s89
      %p91 = scmp.eq.s32.totalorder %s23, 0
      %p92 = por %p90, %p91
      %s94 = sadd.s32 %s93, 1
      %p97 = scmp.eq.s32.totalorder %s17, 1
      %p98 = scmp.ne.s32.totalorder %s93, %s95
      %p99 = scmp.eq.s32.totalorder %s17, 0
      %p100 = por %p98, %p99
      %p101 = scmp.ne.s32.totalorder %s93, %s95
      %p102 = scmp.eq.s32.totalorder %s22, 1
      %p103 = por %p101, %p102
      %p104 = scmp.ne.s32.totalorder %s95, %s96
      %p105 = scmp.eq.s32.totalorder %s22, 0
      %p106 = por %p104, %p105
      %p107 = scmp.ne.s32.totalorder %s95, %s96
      %p108 = scmp.eq.s32.totalorder %s23, 1
      %p109 = por %p107, %p108
      %p111 = scmp.ne.s32.totalorder %s96, %s110
      %p112 = scmp.eq.s32.totalorder %s23, 0
      %p113 = por %p111, %p112
      %s114 = ssub.s32 %s17, %s24
      %p115 = scmp.eq.s32.totalorder %s114, 0
      %s117 = sadd.s32 %s116, 1
      %s118 = scalar_select %p115, %s116, %s117
      %p121 = pneg %p115
      %p122 = scmp.eq.s32.totalorder %s17, 1
      %p123 = por %p121, %p122
      %p124 = scmp.ne.s32.totalorder %s116, %s119
      %p125 = scmp.eq.s32.totalorder %s17, 0
      %p126 = por %p124, %p125
      %p127 = scmp.ne.s32.totalorder %s116, %s119
      %p128 = scmp.eq.s32.totalorder %s22, 1
      %p129 = por %p127, %p128
      %p130 = scmp.ne.s32.totalorder %s119, %s120
      %p131 = scmp.eq.s32.totalorder %s22, 0
      %p132 = por %p130, %p131
      %p133 = scmp.ne.s32.totalorder %s119, %s120
      %p134 = scmp.eq.s32.totalorder %s23, 1
      %p135 = por %p133, %p134
      %p137 = scmp.ne.s32.totalorder %s120, %s136
      %p138 = scmp.eq.s32.totalorder %s23, 0
      %p139 = por %p137, %p138
      %p140 = scmp.le.s32.totalorder 1, %s17
      %p141 = scmp.lt.s32.totalorder %s17, 3
      %p142 = pnand %p140, %p141
      %p143 = pneg %p142
      // Predicated region
      $region9: #{tpu_custom_call.1} parent=5 // pred_check
        _
      $region10: #{tpu_custom_call.1} parent=5 // pred_check_branch
        %145 = sbr.rel (%p142) target = $region12
      $region11: #{tpu_custom_call.1} parent=5 // pred_region
        %s146 = ssub.s32 %s17, 1
        // Predicated region
        $region13: #{tpu_custom_call.1} parent=11 // pred_check
          %p147 = pneg %p64
        $region14: #{tpu_custom_call.1} parent=11 // pred_check_branch
          %149 = sbr.rel (%p147) target = $region16
        $region15: #{tpu_custom_call.1} parent=11 // pred_region
          %s151 = ssub.s32 256, 256
          %152 = vsyncadd [#allocation6], %s151
          %s153 = sshll.u32 [#allocation5], 4
          %s154 = int_to_ptr.vmem [resolvable:$true] %s153
          %159 = dma.hbm_to_vmem [thread:$0]  %s1, 256, %s154, [#allocation6], 64, 64, 4
        $region16: #{tpu_custom_call.1} parent=11 // pred_fallthru
          _
        // Predicated region
        $region17: #{tpu_custom_call.1} parent=11 // pred_check
          %p160 = pneg %p85
        $region18: #{tpu_custom_call.1} parent=11 // pred_check_branch
          %162 = sbr.rel (%p160) target = $region20
        $region19: #{tpu_custom_call.1} parent=11 // pred_region
          %s164 = ssub.s32 256, 256
          %165 = vsyncadd [#allocation6], %s164
          %s166 = sshll.u32 [#allocation7], 4
          %s167 = int_to_ptr.vmem [resolvable:$true] %s166
          %172 = dma.hbm_to_vmem [thread:$0]  %s2, 256, %s167, [#allocation6], 64, 64, 4
        $region20: #{tpu_custom_call.1} parent=11 // pred_fallthru
          _
        // Predicated region
        $region21: #{tpu_custom_call.1} parent=11 // pred_check
          %p173 = pneg %p106
        $region22: #{tpu_custom_call.1} parent=11 // pred_check_branch
          %175 = sbr.rel (%p173) target = $region24
        $region23: #{tpu_custom_call.1} parent=11 // pred_region
          _
        $region24: #{tpu_custom_call.1} parent=11 // pred_fallthru
          _
      $region12: #{tpu_custom_call.1} parent=5 // pred_fallthru
        _
      %p176 = scmp.lt.s32.totalorder %s17, 2
      // Predicated region
      $region25: #{tpu_custom_call.1} parent=5 // pred_check
        %p177 = pneg %p176
      $region26: #{tpu_custom_call.1} parent=5 // pred_check_branch
        %179 = sbr.rel (%p177) target = $region28
      $region27: #{tpu_custom_call.1} parent=5 // pred_region
        // Predicated region
        $region29: #{tpu_custom_call.1} parent=27 // pred_check
          %p180 = pneg %p37
        $region30: #{tpu_custom_call.1} parent=27 // pred_check_branch
          %182 = sbr.rel (%p180) target = $region32
        $region31: #{tpu_custom_call.1} parent=27 // pred_region
          %s183 = sand.u32 %s27, 1
          %s184 = scalar_lea.sflag [#allocation3], %s183
          %s185 = sand.u32 %s27, 1
          %s186 = smul.addr %s185, 8
          %s187 = scalar_lea.vmem [#allocation2], %s186
          %s189 = ssub.s32 128, 128
          %190 = vsyncadd %s184, %s189
          %s191 = smul.addr %s17, 128
          %s192 = scalar_lea.hbm %s0, %s191
          %s194 = sshll.u32 %s187, 4
          %s195 = int_to_ptr.vmem [resolvable:$true] %s194
          %197 = dma.hbm_to_vmem [thread:$0]  %s192, 128, %s195, %s184
        $region32: #{tpu_custom_call.1} parent=27 // pred_fallthru
          _
      $region28: #{tpu_custom_call.1} parent=5 // pred_fallthru
        _
      %p198 = scmp.le.s32.totalorder 1, %s17
      %p199 = scmp.lt.s32.totalorder %s17, 3
      %p200 = pnand %p198, %p199
      %p201 = pneg %p200
      // Predicated region
      $region33: #{tpu_custom_call.1} parent=5 // pred_check
        _
      $region34: #{tpu_custom_call.1} parent=5 // pred_check_branch
        %203 = sbr.rel (%p200) target = $region36
      $region35: #{tpu_custom_call.1} parent=5 // pred_region
        %s204 = ssub.s32 %s17, 1
        %s205 = sand.u32 %s30, 1
        %s206 = scalar_lea.sflag [#allocation3], %s205
        %s207 = sand.u32 %s30, 1
        %s208 = smul.addr %s207, 8
        %s209 = scalar_lea.vmem [#allocation2], %s208
        // Predicated region
        $region37: #{tpu_custom_call.1} parent=35 // pred_check
          %p210 = pneg %p43
        $region38: #{tpu_custom_call.1} parent=35 // pred_check_branch
          %212 = sbr.rel (%p210) target = $region40
        $region39: #{tpu_custom_call.1} parent=35 // pred_region
          %213 = dma.done %s206, 128
        $region40: #{tpu_custom_call.1} parent=35 // pred_fallthru
          _
        // Predicated region
        $region41: #{tpu_custom_call.1} parent=35 // pred_check
          %p214 = pneg %p64
        $region42: #{tpu_custom_call.1} parent=35 // pred_check_branch
          %216 = sbr.rel (%p214) target = $region44
        $region43: #{tpu_custom_call.1} parent=35 // pred_region
          %217 = dma.done [#allocation6], 256
        $region44: #{tpu_custom_call.1} parent=35 // pred_fallthru
          _
        // Predicated region
        $region45: #{tpu_custom_call.1} parent=35 // pred_check
          %p218 = pneg %p85
        $region46: #{tpu_custom_call.1} parent=35 // pred_check_branch
          %220 = sbr.rel (%p218) target = $region48
        $region47: #{tpu_custom_call.1} parent=35 // pred_region
          %221 = dma.done [#allocation6], 256
        $region48: #{tpu_custom_call.1} parent=35 // pred_fallthru
          _
        %s222 = sand.u32 %s30, 1
        %s223 = scalar_lea.sflag [#allocation3], %s222
        %s224 = sand.u32 %s30, 1
        %s225 = smul.addr %s224, 8
        %s226 = scalar_lea.vmem [#allocation2], %s225
        %p227 = pneg %p43
        %p228 = pneg %p40
        %p229 = pneg %p64
        %p230 = pneg %p61
        %p231 = pneg %p85
        %p232 = pneg %p82
        %p233 = pneg %p106
        %p234 = pneg %p103
        %p235 = pneg %p132
        %p236 = pneg %p129
        %s237 = sand.u32 %s119, 1
        %s238 = scalar_lea.sflag [#allocation4], %s237
        %s239 = sand.u32 %s119, 1
        %s240 = smul.addr %s239, 8
        %s241 = scalar_lea.vmem [#allocation8], %s240
        %v243 = vld [vmem:[%s209] sm:$0xff]
        %v244 = vpack.c.bf16 %v243, %v243
        %v245 = vld [vmem:[#allocation5] sm:$0xf]
        %v246 = vld [vmem:[#allocation5 + $0x4] sm:$0xf]
        %v247 = vld [vmem:[#allocation5 + $0x8] sm:$0xf]
        %v248 = vld [vmem:[#allocation5 + $0xc] sm:$0xf]
        %v253 = vunpack.c.l.b16 %v245
        %v254 = vunpack.c.l.b16 %v246
        %v255 = vunpack.c.l.b16 %v247
        %v256 = vunpack.c.l.b16 %v248
        %v257 = vpack.c.b16 %v254, %v253
        %v258 = vpack.c.b16 %v256, %v255
        %vm261 = vcmask 261120
        %v263 = vsel %vm261, %v244, 0
        %265 = vmatprep.subr.bf16.mxu0 0
        %266 = vmatpush1.bf16.msra.mxu0 %v257
        %267 = vmatprep.subr.bf16.mxu0 0
        %268 = vmatpush1.bf16.msra.mxu0 %v258
        %269 = vmatprep.subr.bf16.mxu0 0
        %270 = vmatpush1.bf16.msra.mxu0 0
        %271 = vmatprep.subr.bf16.mxu0 0
        %272 = vmatpush1.bf16.msra.mxu0 0
        %273 = vmatprep.subr.bf16.mxu0 0
        %274 = vmatpush1.bf16.msra.mxu0 0
        %275 = vmatprep.subr.bf16.mxu0 0
        %276 = vmatpush1.bf16.msra.mxu0 0
        %277 = vmatprep.subr.bf16.mxu0 0
        %278 = vmatpush1.bf16.msra.mxu0 0
        %279 = vmatprep.subr.bf16.mxu0 0
        %280 = vmatpush1.bf16.msra.mxu0 0
        %281 = vmatprep.subr.bf16.mxu0 0
        %282 = vmatpush1.bf16.msra.mxu0 0
        %283 = vmatprep.subr.bf16.mxu0 0
        %284 = vmatpush1.bf16.msra.mxu0 0
        %285 = vmatprep.subr.bf16.mxu0 0
        %286 = vmatpush1.bf16.msra.mxu0 0
        %287 = vmatprep.subr.bf16.mxu0 0
        %288 = vmatpush1.bf16.msra.mxu0 0
        %289 = vmatprep.subr.bf16.mxu0 0
        %290 = vmatpush1.bf16.msra.mxu0 0
        %291 = vmatprep.subr.bf16.mxu0 0
        %292 = vmatpush1.bf16.msra.mxu0 0
        %293 = vmatprep.subr.bf16.mxu0 0
        %294 = vmatpush1.bf16.msra.mxu0 0
        %295 = vmatprep.subr.bf16.mxu0 0
        %296 = vmatpush1.bf16.msra.mxu0 0
        %297 = vmatprep.mubr.bf16.mxu0 0
        %298 = vmatmul.mubr.bf16.gmra.mrb[0].mxu0 %v263
        %v299 = vpop.f32.mrb[0].mxu0
        %v300 = vadd.f32 0.0, %v299
        %v301 = vpop.f32.mrb[0].mxu0
        %v302 = vpop.f32.mrb[0].mxu0
        %v303 = vpop.f32.mrb[0].mxu0
        %304 = vdwg.mxu0
        %v305 = vmul.f32 %v300, 0.35355338
        %v306 = vpack.c.bf16 %v305, %v305
        %v307 = vpack.c.bf16 %v300, %v300
        %309 = vrot.lane.b32.xlu0 %v307, 96
        %v310 = vpop.permute.xlu0 %309
        %vm311 = vcmask 64512
        %v313 = vsel %vm311, %v306, 0
        %v316 = vsel %vm311, %v310, 0
        %318 = vmatprep.subr.bf16.mxu0 0
        %319 = vmatpush1.bf16.xpose.msra.mxu0 %v316
        %320 = vmatprep.subr.bf16.mxu0 0
        %321 = vmatpush1.bf16.xpose.msra.mxu0 0
        %322 = vmatprep.subr.bf16.mxu0 0
        %323 = vmatpush1.bf16.xpose.msra.mxu0 0
        %324 = vmatprep.subr.bf16.mxu0 0
        %325 = vmatpush1.bf16.xpose.msra.mxu0 0
        %326 = vmatprep.subr.bf16.mxu0 0
        %327 = vmatpush1.bf16.xpose.msra.mxu0 0
        %328 = vmatprep.subr.bf16.mxu0 0
        %329 = vmatpush1.bf16.xpose.msra.mxu0 0
        %330 = vmatprep.subr.bf16.mxu0 0
        %331 = vmatpush1.bf16.xpose.msra.mxu0 0
        %332 = vmatprep.subr.bf16.mxu0 0
        %333 = vmatpush1.bf16.xpose.msra.mxu0 0
        %334 = vmatprep.subr.bf16.mxu0 0
        %335 = vmatpush1.bf16.xpose.msra.mxu0 0
        %336 = vmatprep.subr.bf16.mxu0 0
        %337 = vmatpush1.bf16.xpose.msra.mxu0 0
        %338 = vmatprep.subr.bf16.mxu0 0
        %339 = vmatpush1.bf16.xpose.msra.mxu0 0
        %340 = vmatprep.subr.bf16.mxu0 0
        %341 = vmatpush1.bf16.xpose.msra.mxu0 0
        %342 = vmatprep.subr.bf16.mxu0 0
        %343 = vmatpush1.bf16.xpose.msra.mxu0 0
        %344 = vmatprep.subr.bf16.mxu0 0
        %345 = vmatpush1.bf16.xpose.msra.mxu0 0
        %346 = vmatprep.subr.bf16.mxu0 0
        %347 = vmatpush1.bf16.xpose.msra.mxu0 0
        %348 = vmatprep.subr.bf16.mxu0 0
        %349 = vmatpush1.bf16.xpose.msra.mxu0 0
        %350 = vmatprep.mubr.bf16.mxu0 0
        %351 = vmatmul.mubr.bf16.gmra.mrb[0].mxu0 %v313
        %v352 = vpop.f32.mrb[0].mxu0
        %v353 = vadd.f32 0.0, %v352
        %v354 = vpop.f32.mrb[0].mxu0
        %v355 = vpop.f32.mrb[0].mxu0
        %v356 = vpop.f32.mrb[0].mxu0
        %357 = vdwg.mxu0
        %v358 = vsel %vm311, %v353, -inf
        %359 = vmax.xlane.f32.xlu0 %v358
        %v360 = vpop.xlane.xlu0 %359
        %v361 = vsub.f32 %v353, %v360
        %v362 = vmul.f32 %v361, 1.442695
        %v363 = vpow.pop %v362
        %v364 = vsel %vm311, %v363, 0.0
        %365 = vadd.xlane.f32.xlu0 %v364
        %v366 = vpop.xlane.xlu0 %365
        %v367 = vrcp.pop %v366
        %v368 = vmul.f32 %v363, %v367
        %v369 = vpack.c.bf16 %v368, %v368
        %370 = vrot.lane.b32.xlu0 %v307, 64
        %v371 = vpop.permute.xlu0 %370
        %v373 = vsel %vm311, %v369, 0
        %vm375 = vcmask 1043456
        %v377 = vsel %vm375, %v371, 0
        %379 = vmatprep.subr.bf16.mxu0 0
        %380 = vmatpush1.bf16.msra.mxu0 %v377
        %381 = vmatprep.subr.bf16.mxu0 0
        %382 = vmatpush1.bf16.msra.mxu0 0
        %383 = vmatprep.subr.bf16.mxu0 0
        %384 = vmatpush1.bf16.msra.mxu0 0
        %385 = vmatprep.subr.bf16.mxu0 0
        %386 = vmatpush1.bf16.msra.mxu0 0
        %387 = vmatprep.subr.bf16.mxu0 0
        %388 = vmatpush1.bf16.msra.mxu0 0
        %389 = vmatprep.subr.bf16.mxu0 0
        %390 = vmatpush1.bf16.msra.mxu0 0
        %391 = vmatprep.subr.bf16.mxu0 0
        %392 = vmatpush1.bf16.msra.mxu0 0
        %393 = vmatprep.subr.bf16.mxu0 0
        %394 = vmatpush1.bf16.msra.mxu0 0
        %395 = vmatprep.subr.bf16.mxu0 0
        %396 = vmatpush1.bf16.msra.mxu0 0
        %397 = vmatprep.subr.bf16.mxu0 0
        %398 = vmatpush1.bf16.msra.mxu0 0
        %399 = vmatprep.subr.bf16.mxu0 0
        %400 = vmatpush1.bf16.msra.mxu0 0
        %401 = vmatprep.subr.bf16.mxu0 0
        %402 = vmatpush1.bf16.msra.mxu0 0
        %403 = vmatprep.subr.bf16.mxu0 0
        %404 = vmatpush1.bf16.msra.mxu0 0
        %405 = vmatprep.subr.bf16.mxu0 0
        %406 = vmatpush1.bf16.msra.mxu0 0
        %407 = vmatprep.subr.bf16.mxu0 0
        %408 = vmatpush1.bf16.msra.mxu0 0
        %409 = vmatprep.subr.bf16.mxu0 0
        %410 = vmatpush1.bf16.msra.mxu0 0
        %411 = vmatprep.mubr.bf16.mxu0 0
        %412 = vmatmul.mubr.bf16.gmra.mrb[0].mxu0 %v373
        %v413 = vpop.f32.mrb[0].mxu0
        %v414 = vadd.f32 0.0, %v413
        %v415 = vpop.f32.mrb[0].mxu0
        %v416 = vpop.f32.mrb[0].mxu0
        %v417 = vpop.f32.mrb[0].mxu0
        %418 = vdwg.mxu0
        %420 = vrot.lane.b32.xlu0 %v306, 120
        %v421 = vpop.permute.xlu0 %420
        %422 = vrot.lane.b32.xlu0 %v307, 88
        %v423 = vpop.permute.xlu0 %422
        %v425 = vsel %vm311, %v421, 0
        %v428 = vsel %vm311, %v423, 0
        %430 = vmatprep.subr.bf16.mxu0 0
        %431 = vmatpush1.bf16.xpose.msra.mxu0 %v428
        %432 = vmatprep.subr.bf16.mxu0 0
        %433 = vmatpush1.bf16.xpose.msra.mxu0 0
        %434 = vmatprep.subr.bf16.mxu0 0
        %435 = vmatpush1.bf16.xpose.msra.mxu0 0
        %436 = vmatprep.subr.bf16.mxu0 0
        %437 = vmatpush1.bf16.xpose.msra.mxu0 0
        %438 = vmatprep.subr.bf16.mxu0 0
        %439 = vmatpush1.bf16.xpose.msra.mxu0 0
        %440 = vmatprep.subr.bf16.mxu0 0
        %441 = vmatpush1.bf16.xpose.msra.mxu0 0
        %442 = vmatprep.subr.bf16.mxu0 0
        %443 = vmatpush1.bf16.xpose.msra.mxu0 0
        %444 = vmatprep.subr.bf16.mxu0 0
        %445 = vmatpush1.bf16.xpose.msra.mxu0 0
        %446 = vmatprep.subr.bf16.mxu0 0
        %447 = vmatpush1.bf16.xpose.msra.mxu0 0
        %448 = vmatprep.subr.bf16.mxu0 0
        %449 = vmatpush1.bf16.xpose.msra.mxu0 0
        %450 = vmatprep.subr.bf16.mxu0 0
        %451 = vmatpush1.bf16.xpose.msra.mxu0 0
        %452 = vmatprep.subr.bf16.mxu0 0
        %453 = vmatpush1.bf16.xpose.msra.mxu0 0
        %454 = vmatprep.subr.bf16.mxu0 0
        %455 = vmatpush1.bf16.xpose.msra.mxu0 0
        %456 = vmatprep.subr.bf16.mxu0 0
        %457 = vmatpush1.bf16.xpose.msra.mxu0 0
        %458 = vmatprep.subr.bf16.mxu0 0
        %459 = vmatpush1.bf16.xpose.msra.mxu0 0
        %460 = vmatprep.subr.bf16.mxu0 0
        %461 = vmatpush1.bf16.xpose.msra.mxu0 0
        %462 = vmatprep.mubr.bf16.mxu0 0
        %463 = vmatmul.mubr.bf16.gmra.mrb[0].mxu0 %v425
        %v464 = vpop.f32.mrb[0].mxu0
        %v465 = vadd.f32 0.0, %v464
        %v466 = vpop.f32.mrb[0].mxu0
        %v467 = vpop.f32.mrb[0].mxu0
        %v468 = vpop.f32.mrb[0].mxu0
        %469 = vdwg.mxu0
        %v470 = vsel %vm311, %v465, -inf
        %471 = vmax.xlane.f32.xlu0 %v470
        %v472 = vpop.xlane.xlu0 %471
        %v473 = vsub.f32 %v465, %v472
        %v474 = vmul.f32 %v473, 1.442695
        %v475 = vpow.pop %v474
        %v476 = vsel %vm311, %v475, 0.0
        %477 = vadd.xlane.f32.xlu0 %v476
        %v478 = vpop.xlane.xlu0 %477
        %v479 = vrcp.pop %v478
        %v480 = vmul.f32 %v475, %v479
        %v481 = vpack.c.bf16 %v480, %v480
        %482 = vrot.lane.b32.xlu0 %v307, 56
        %v483 = vpop.permute.xlu0 %482
        %v485 = vsel %vm311, %v481, 0
        %v488 = vsel %vm375, %v483, 0
        %490 = vmatprep.subr.bf16.mxu0 0
        %491 = vmatpush1.bf16.msra.mxu0 %v488
        %492 = vmatprep.subr.bf16.mxu0 0
        %493 = vmatpush1.bf16.msra.mxu0 0
        %494 = vmatprep.subr.bf16.mxu0 0
        %495 = vmatpush1.bf16.msra.mxu0 0
        %496 = vmatprep.subr.bf16.mxu0 0
        %497 = vmatpush1.bf16.msra.mxu0 0
        %498 = vmatprep.subr.bf16.mxu0 0
        %499 = vmatpush1.bf16.msra.mxu0 0
        %500 = vmatprep.subr.bf16.mxu0 0
        %501 = vmatpush1.bf16.msra.mxu0 0
        %502 = vmatprep.subr.bf16.mxu0 0
        %503 = vmatpush1.bf16.msra.mxu0 0
        %504 = vmatprep.subr.bf16.mxu0 0
        %505 = vmatpush1.bf16.msra.mxu0 0
        %506 = vmatprep.subr.bf16.mxu0 0
        %507 = vmatpush1.bf16.msra.mxu0 0
        %508 = vmatprep.subr.bf16.mxu0 0
        %509 = vmatpush1.bf16.msra.mxu0 0
        %510 = vmatprep.subr.bf16.mxu0 0
        %511 = vmatpush1.bf16.msra.mxu0 0
        %512 = vmatprep.subr.bf16.mxu0 0
        %513 = vmatpush1.bf16.msra.mxu0 0
        %514 = vmatprep.subr.bf16.mxu0 0
        %515 = vmatpush1.bf16.msra.mxu0 0
        %516 = vmatprep.subr.bf16.mxu0 0
        %517 = vmatpush1.bf16.msra.mxu0 0
        %518 = vmatprep.subr.bf16.mxu0 0
        %519 = vmatpush1.bf16.msra.mxu0 0
        %520 = vmatprep.subr.bf16.mxu0 0
        %521 = vmatpush1.bf16.msra.mxu0 0
        %522 = vmatprep.mubr.bf16.mxu0 0
        %523 = vmatmul.mubr.bf16.gmra.mrb[0].mxu0 %v485
        %v524 = vpop.f32.mrb[0].mxu0
        %v525 = vadd.f32 0.0, %v524
        %v526 = vpop.f32.mrb[0].mxu0
        %v527 = vpop.f32.mrb[0].mxu0
        %v528 = vpop.f32.mrb[0].mxu0
        %529 = vdwg.mxu0
        %530 = vrot.lane.b32.xlu0 %v306, 112
        %v531 = vpop.permute.xlu0 %530
        %532 = vrot.lane.b32.xlu0 %v307, 80
        %v533 = vpop.permute.xlu0 %532
        %v535 = vsel %vm311, %v531, 0
        %v538 = vsel %vm311, %v533, 0
        %540 = vmatprep.subr.bf16.mxu0 0
        %541 = vmatpush1.bf16.xpose.msra.mxu0 %v538
        %542 = vmatprep.subr.bf16.mxu0 0
        %543 = vmatpush1.bf16.xpose.msra.mxu0 0
        %544 = vmatprep.subr.bf16.mxu0 0
        %545 = vmatpush1.bf16.xpose.msra.mxu0 0
        %546 = vmatprep.subr.bf16.mxu0 0
        %547 = vmatpush1.bf16.xpose.msra.mxu0 0
        %548 = vmatprep.subr.bf16.mxu0 0
        %549 = vmatpush1.bf16.xpose.msra.mxu0 0
        %550 = vmatprep.subr.bf16.mxu0 0
        %551 = vmatpush1.bf16.xpose.msra.mxu0 0
        %552 = vmatprep.subr.bf16.mxu0 0
        %553 = vmatpush1.bf16.xpose.msra.mxu0 0
        %554 = vmatprep.subr.bf16.mxu0 0
        %555 = vmatpush1.bf16.xpose.msra.mxu0 0
        %556 = vmatprep.subr.bf16.mxu0 0
        %557 = vmatpush1.bf16.xpose.msra.mxu0 0
        %558 = vmatprep.subr.bf16.mxu0 0
        %559 = vmatpush1.bf16.xpose.msra.mxu0 0
        %560 = vmatprep.subr.bf16.mxu0 0
        %561 = vmatpush1.bf16.xpose.msra.mxu0 0
        %562 = vmatprep.subr.bf16.mxu0 0
        %563 = vmatpush1.bf16.xpose.msra.mxu0 0
        %564 = vmatprep.subr.bf16.mxu0 0
        %565 = vmatpush1.bf16.xpose.msra.mxu0 0
        %566 = vmatprep.subr.bf16.mxu0 0
        %567 = vmatpush1.bf16.xpose.msra.mxu0 0
        %568 = vmatprep.subr.bf16.mxu0 0
        %569 = vmatpush1.bf16.xpose.msra.mxu0 0
        %570 = vmatprep.subr.bf16.mxu0 0
        %571 = vmatpush1.bf16.xpose.msra.mxu0 0
        %572 = vmatprep.mubr.bf16.mxu0 0
        %573 = vmatmul.mubr.bf16.gmra.mrb[0].mxu0 %v535
        %v574 = vpop.f32.mrb[0].mxu0
        %v575 = vadd.f32 0.0, %v574
        %v576 = vpop.f32.mrb[0].mxu0
        %v577 = vpop.f32.mrb[0].mxu0
        %v578 = vpop.f32.mrb[0].mxu0
        %579 = vdwg.mxu0
        %v580 = vsel %vm311, %v575, -inf
        %581 = vmax.xlane.f32.xlu0 %v580
        %v582 = vpop.xlane.xlu0 %581
        %v583 = vsub.f32 %v575, %v582
        %v584 = vmul.f32 %v583, 1.442695
        %v585 = vpow.pop %v584
        %v586 = vsel %vm311, %v585, 0.0
        %587 = vadd.xlane.f32.xlu0 %v586
        %v588 = vpop.xlane.xlu0 %587
        %v589 = vrcp.pop %v588
        %v590 = vmul.f32 %v585, %v589
        %v591 = vpack.c.bf16 %v590, %v590
        %592 = vrot.lane.b32.xlu0 %v307, 48
        %v593 = vpop.permute.xlu0 %592
        %v595 = vsel %vm311, %v591, 0
        %v598 = vsel %vm375, %v593, 0
        %600 = vmatprep.subr.bf16.mxu0 0
        %601 = vmatpush1.bf16.msra.mxu0 %v598
        %602 = vmatprep.subr.bf16.mxu0 0
        %603 = vmatpush1.bf16.msra.mxu0 0
        %604 = vmatprep.subr.bf16.mxu0 0
        %605 = vmatpush1.bf16.msra.mxu0 0
        %606 = vmatprep.subr.bf16.mxu0 0
        %607 = vmatpush1.bf16.msra.mxu0 0
        %608 = vmatprep.subr.bf16.mxu0 0
        %609 = vmatpush1.bf16.msra.mxu0 0
        %610 = vmatprep.subr.bf16.mxu0 0
        %611 = vmatpush1.bf16.msra.mxu0 0
        %612 = vmatprep.subr.bf16.mxu0 0
        %613 = vmatpush1.bf16.msra.mxu0 0
        %614 = vmatprep.subr.bf16.mxu0 0
        %615 = vmatpush1.bf16.msra.mxu0 0
        %616 = vmatprep.subr.bf16.mxu0 0
        %617 = vmatpush1.bf16.msra.mxu0 0
        %618 = vmatprep.subr.bf16.mxu0 0
        %619 = vmatpush1.bf16.msra.mxu0 0
        %620 = vmatprep.subr.bf16.mxu0 0
        %621 = vmatpush1.bf16.msra.mxu0 0
        %622 = vmatprep.subr.bf16.mxu0 0
        %623 = vmatpush1.bf16.msra.mxu0 0
        %624 = vmatprep.subr.bf16.mxu0 0
        %625 = vmatpush1.bf16.msra.mxu0 0
        %626 = vmatprep.subr.bf16.mxu0 0
        %627 = vmatpush1.bf16.msra.mxu0 0
        %628 = vmatprep.subr.bf16.mxu0 0
        %629 = vmatpush1.bf16.msra.mxu0 0
        %630 = vmatprep.subr.bf16.mxu0 0
        %631 = vmatpush1.bf16.msra.mxu0 0
        %632 = vmatprep.mubr.bf16.mxu0 0
        %633 = vmatmul.mubr.bf16.gmra.mrb[0].mxu0 %v595
        %v634 = vpop.f32.mrb[0].mxu0
        %v635 = vadd.f32 0.0, %v634
        %v636 = vpop.f32.mrb[0].mxu0
        %v637 = vpop.f32.mrb[0].mxu0
        %v638 = vpop.f32.mrb[0].mxu0
        %639 = vdwg.mxu0
        %640 = vrot.lane.b32.xlu0 %v306, 104
        %v641 = vpop.permute.xlu0 %640
        %642 = vrot.lane.b32.xlu0 %v307, 72
        %v643 = vpop.permute.xlu0 %642
        %v645 = vsel %vm311, %v641, 0
        %v648 = vsel %vm311, %v643, 0
        %650 = vmatprep.subr.bf16.mxu0 0
        %651 = vmatpush1.bf16.xpose.msra.mxu0 %v648
        %652 = vmatprep.subr.bf16.mxu0 0
        %653 = vmatpush1.bf16.xpose.msra.mxu0 0
        %654 = vmatprep.subr.bf16.mxu0 0
        %655 = vmatpush1.bf16.xpose.msra.mxu0 0
        %656 = vmatprep.subr.bf16.mxu0 0
        %657 = vmatpush1.bf16.xpose.msra.mxu0 0
        %658 = vmatprep.subr.bf16.mxu0 0
        %659 = vmatpush1.bf16.xpose.msra.mxu0 0
        %660 = vmatprep.subr.bf16.mxu0 0
        %661 = vmatpush1.bf16.xpose.msra.mxu0 0
        %662 = vmatprep.subr.bf16.mxu0 0
        %663 = vmatpush1.bf16.xpose.msra.mxu0 0
        %664 = vmatprep.subr.bf16.mxu0 0
        %665 = vmatpush1.bf16.xpose.msra.mxu0 0
        %666 = vmatprep.subr.bf16.mxu0 0
        %667 = vmatpush1.bf16.xpose.msra.mxu0 0
        %668 = vmatprep.subr.bf16.mxu0 0
        %669 = vmatpush1.bf16.xpose.msra.mxu0 0
        %670 = vmatprep.subr.bf16.mxu0 0
        %671 = vmatpush1.bf16.xpose.msra.mxu0 0
        %672 = vmatprep.subr.bf16.mxu0 0
        %673 = vmatpush1.bf16.xpose.msra.mxu0 0
        %674 = vmatprep.subr.bf16.mxu0 0
        %675 = vmatpush1.bf16.xpose.msra.mxu0 0
        %676 = vmatprep.subr.bf16.mxu0 0
        %677 = vmatpush1.bf16.xpose.msra.mxu0 0
        %678 = vmatprep.subr.bf16.mxu0 0
        %679 = vmatpush1.bf16.xpose.msra.mxu0 0
        %680 = vmatprep.subr.bf16.mxu0 0
        %681 = vmatpush1.bf16.xpose.msra.mxu0 0
        %682 = vmatprep.mubr.bf16.mxu0 0
        %683 = vmatmul.mubr.bf16.gmra.mrb[0].mxu0 %v645
        %v684 = vpop.f32.mrb[0].mxu0
        %v685 = vadd.f32 0.0, %v684
        %v686 = vpop.f32.mrb[0].mxu0
        %v687 = vpop.f32.mrb[0].mxu0
        %v688 = vpop.f32.mrb[0].mxu0
        %689 = vdwg.mxu0
        %v690 = vsel %vm311, %v685, -inf
        %691 = vmax.xlane.f32.xlu0 %v690
        %v692 = vpop.xlane.xlu0 %691
        %v693 = vsub.f32 %v685, %v692
        %v694 = vmul.f32 %v693, 1.442695
        %v695 = vpow.pop %v694
        %v696 = vsel %vm311, %v695, 0.0
        %697 = vadd.xlane.f32.xlu0 %v696
        %v698 = vpop.xlane.xlu0 %697
        %v699 = vrcp.pop %v698
        %v700 = vmul.f32 %v695, %v699
        %v701 = vpack.c.bf16 %v700, %v700
        %702 = vrot.lane.b32.xlu0 %v307, 40
        %v703 = vpop.permute.xlu0 %702
        %v705 = vsel %vm311, %v701, 0
        %v708 = vsel %vm375, %v703, 0
        %710 = vmatprep.subr.bf16.mxu0 0
        %711 = vmatpush1.bf16.msra.mxu0 %v708
        %712 = vmatprep.subr.bf16.mxu0 0
        %713 = vmatpush1.bf16.msra.mxu0 0
        %714 = vmatprep.subr.bf16.mxu0 0
        %715 = vmatpush1.bf16.msra.mxu0 0
        %716 = vmatprep.subr.bf16.mxu0 0
        %717 = vmatpush1.bf16.msra.mxu0 0
        %718 = vmatprep.subr.bf16.mxu0 0
        %719 = vmatpush1.bf16.msra.mxu0 0
        %720 = vmatprep.subr.bf16.mxu0 0
        %721 = vmatpush1.bf16.msra.mxu0 0
        %722 = vmatprep.subr.bf16.mxu0 0
        %723 = vmatpush1.bf16.msra.mxu0 0
        %724 = vmatprep.subr.bf16.mxu0 0
        %725 = vmatpush1.bf16.msra.mxu0 0
        %726 = vmatprep.subr.bf16.mxu0 0
        %727 = vmatpush1.bf16.msra.mxu0 0
        %728 = vmatprep.subr.bf16.mxu0 0
        %729 = vmatpush1.bf16.msra.mxu0 0
        %730 = vmatprep.subr.bf16.mxu0 0
        %731 = vmatpush1.bf16.msra.mxu0 0
        %732 = vmatprep.subr.bf16.mxu0 0
        %733 = vmatpush1.bf16.msra.mxu0 0
        %734 = vmatprep.subr.bf16.mxu0 0
        %735 = vmatpush1.bf16.msra.mxu0 0
        %736 = vmatprep.subr.bf16.mxu0 0
        %737 = vmatpush1.bf16.msra.mxu0 0
        %738 = vmatprep.subr.bf16.mxu0 0
        %739 = vmatpush1.bf16.msra.mxu0 0
        %740 = vmatprep.subr.bf16.mxu0 0
        %741 = vmatpush1.bf16.msra.mxu0 0
        %742 = vmatprep.mubr.bf16.mxu0 0
        %743 = vmatmul.mubr.bf16.gmra.mrb[0].mxu0 %v705
        %v744 = vpop.f32.mrb[0].mxu0
        %v745 = vadd.f32 0.0, %v744
        %v746 = vpop.f32.mrb[0].mxu0
        %v747 = vpop.f32.mrb[0].mxu0
        %v748 = vpop.f32.mrb[0].mxu0
        %749 = vdwg.mxu0
        %751 = vrot.lane.b32.xlu0 %v525, 8
        %v752 = vpop.permute.xlu0 %751
        %755 = vrot.lane.b32.xlu0 %v635, 16
        %v756 = vpop.permute.xlu0 %755
        %759 = vrot.lane.b32.xlu0 %v745, 24
        %v760 = vpop.permute.xlu0 %759
        %v762 = vsel %vm311, %v414, %v752
        %vm763 = vcmask 130048
        %v764 = vsel %vm763, %v762, %v756
        %vm765 = vcmask 195584
        %v766 = vsel %vm765, %v764, %v760
        %v767 = vpack.c.bf16 %v766, %v766
        %v768 = vld [vmem:[#allocation7] sm:$0xf]
        %v769 = vld [vmem:[#allocation7 + $0x4] sm:$0xf]
        %v770 = vld [vmem:[#allocation7 + $0x8] sm:$0xf]
        %v771 = vld [vmem:[#allocation7 + $0xc] sm:$0xf]
        %v772 = vld [vmem:[%s3] sm:$0x1]
        %v774 = vlaneseq
        %v775 = vshrl.u32 %v774, 7
        %v776 = vsub.s32 0, %v775
        %v777 = vrot.slane %v772, %v776
        %v783 = vunpack.c.l.b16 %v768
        %v784 = vunpack.c.l.b16 %v769
        %v785 = vunpack.c.l.b16 %v770
        %v786 = vunpack.c.l.b16 %v771
        %v787 = vpack.c.b16 %v784, %v783
        %v788 = vpack.c.b16 %v786, %v785
        %v792 = vsel %vm261, %v767, 0
        %794 = vmatprep.subr.bf16.mxu0 0
        %795 = vmatpush1.bf16.msra.mxu0 %v787
        %796 = vmatprep.subr.bf16.mxu0 0
        %797 = vmatpush1.bf16.msra.mxu0 %v788
        %798 = vmatprep.subr.bf16.mxu0 0
        %799 = vmatpush1.bf16.msra.mxu0 0
        %800 = vmatprep.subr.bf16.mxu0 0
        %801 = vmatpush1.bf16.msra.mxu0 0
        %802 = vmatprep.subr.bf16.mxu0 0
        %803 = vmatpush1.bf16.msra.mxu0 0
        %804 = vmatprep.subr.bf16.mxu0 0
        %805 = vmatpush1.bf16.msra.mxu0 0
        %806 = vmatprep.subr.bf16.mxu0 0
        %807 = vmatpush1.bf16.msra.mxu0 0
        %808 = vmatprep.subr.bf16.mxu0 0
        %809 = vmatpush1.bf16.msra.mxu0 0
        %810 = vmatprep.subr.bf16.mxu0 0
        %811 = vmatpush1.bf16.msra.mxu0 0
        %812 = vmatprep.subr.bf16.mxu0 0
        %813 = vmatpush1.bf16.msra.mxu0 0
        %814 = vmatprep.subr.bf16.mxu0 0
        %815 = vmatpush1.bf16.msra.mxu0 0
        %816 = vmatprep.subr.bf16.mxu0 0
        %817 = vmatpush1.bf16.msra.mxu0 0
        %818 = vmatprep.subr.bf16.mxu0 0
        %819 = vmatpush1.bf16.msra.mxu0 0
        %820 = vmatprep.subr.bf16.mxu0 0
        %821 = vmatpush1.bf16.msra.mxu0 0
        %822 = vmatprep.subr.bf16.mxu0 0
        %823 = vmatpush1.bf16.msra.mxu0 0
        %824 = vmatprep.subr.bf16.mxu0 0
        %825 = vmatpush1.bf16.msra.mxu0 0
        %826 = vmatprep.mubr.bf16.mxu0 0
        %827 = vmatmul.mubr.bf16.gmra.mrb[0].mxu0 %v792
        %v828 = vpop.f32.mrb[0].mxu0
        %v829 = vadd.f32 %v777, %v828
        %v830 = vpop.f32.mrb[0].mxu0
        %v831 = vpop.f32.mrb[0].mxu0
        %v832 = vpop.f32.mrb[0].mxu0
        %833 = vdwg.mxu0
        %834 = vst.msk [vmem:[%s241] sm:$0xff] %vm261, %v829
        %s835 = sand.u32 %s119, 1
        %s836 = scalar_lea.sflag [#allocation4], %s835
        %s837 = sand.u32 %s119, 1
        %s838 = smul.addr %s837, 8
        %s839 = scalar_lea.vmem [#allocation8], %s838
        // Predicated region
        $region49: #{tpu_custom_call.1} parent=35 // pred_check
          %p840 = pneg %p129
        $region50: #{tpu_custom_call.1} parent=35 // pred_check_branch
          %842 = sbr.rel (%p840) target = $region52
        $region51: #{tpu_custom_call.1} parent=35 // pred_region
          %s844 = ssub.s32 128, 128
          %845 = vsyncadd %s836, %s844
          %s846 = smul.addr %s22, 128
          %s847 = scalar_lea.hbm %s4, %s846
          %s849 = sshll.u32 %s839, 4
          %s850 = int_to_ptr.vmem [resolvable:$true] %s849
          %852 = dma.vmem_to_hbm [thread:$0]  %s850, 128, %s847, %s836
        $region52: #{tpu_custom_call.1} parent=35 // pred_fallthru
          _
      $region36: #{tpu_custom_call.1} parent=5 // pred_fallthru
        _
      %p853 = scmp.le.s32.totalorder 2, %s17
      // Predicated region
      $region53: #{tpu_custom_call.1} parent=5 // pred_check
        %p854 = pneg %p853
      $region54: #{tpu_custom_call.1} parent=5 // pred_check_branch
        %856 = sbr.rel (%p854) target = $region56
      $region55: #{tpu_custom_call.1} parent=5 // pred_region
        %s857 = ssub.s32 %s17, 2
        // Predicated region
        $region57: #{tpu_custom_call.1} parent=55 // pred_check
          %p858 = pneg %p135
        $region58: #{tpu_custom_call.1} parent=55 // pred_check_branch
          %860 = sbr.rel (%p858) target = $region60
        $region59: #{tpu_custom_call.1} parent=55 // pred_region
          %s861 = sand.u32 %s120, 1
          %s862 = scalar_lea.sflag [#allocation4], %s861
          %s863 = sand.u32 %s120, 1
          %s864 = smul.addr %s863, 8
          %s865 = scalar_lea.vmem [#allocation8], %s864
          %866 = dma.done %s862, 128
        $region60: #{tpu_custom_call.1} parent=55 // pred_fallthru
          _
      $region56: #{tpu_custom_call.1} parent=5 // pred_fallthru
        _
    $region6: #{tpu_custom_call.1} parent=1 // loop_footer
      %s21 = sadd.s32 1, %s17
    $region7: #{tpu_custom_call.1} parent=1 // loop_footer_branch
      %16 = sbr.rel target = $region3
    $region8: #{tpu_custom_call.1} parent=1 // loop_exit
      _
    %867 = vsyncpa [#allocation3], 1
    %s868 = scalar_lea.sflag [#allocation3], 1
    %869 = vsyncpa %s868, 1
    %870 = vsyncpa [#allocation6], 1
    %871 = vsyncpa [#allocation4], 1
    %s872 = scalar_lea.sflag [#allocation4], 1
    %873 = vsyncpa %s872, 1

</llo_original>
